<compile_context>
chip_gen: v7x
topology: tpu7x:2x2x1
jax: 0.10.0
libtpu: 0.0.40
codegen_flags: <defaults>
</compile_context>

<pallas_src>
import functools

import jax
import jax.numpy as jnp
from jax.experimental import pallas as pl
from jax.experimental.pallas import tpu as pltpu


VMEM_LIMIT_BYTES = 48 * 1024 * 1024   # conservative across v5e/v6e/v7x [R5]


# --------------------------------------------------------------------------- #
# Batched matmul + bias kernel (hoisted input GEMM and deferred vocab
# projection). bf16 operands, f32 accumulate. Grid is (M-tiles, N-tiles), both
# "parallel" -> shards across TCs on v7x. Output tiles are lane-dense (N padded
# to a multiple of 128 at the wrapper).                               [R1][R4]
# --------------------------------------------------------------------------- #
def _matmul_bias_kernel(x_ref, w_ref, b_ref, o_ref):
    o_ref[...] = (jnp.dot(x_ref[...], w_ref[...],
                          preferred_element_type=jnp.float32)
                  + b_ref[...])


def matmul_bias(x, w, b, *, max_tile_m=512, max_tile_n=1024,
                vmem_limit_bytes=VMEM_LIMIT_BYTES):
    """x: (M, K) bf16, w: (K, N) bf16, b: (1, N) f32 -> (M, N) f32."""
    M, K = x.shape
    Kw, N = w.shape
    assert Kw == K and b.shape == (1, N)
    assert max_tile_n % 128 == 0

    # Lane-pad N to a multiple of 128 (unmasked vst on the output).       [R4]
    n_pad = (-N) % 128
    if n_pad:
        w = jnp.pad(w, ((0, 0), (0, n_pad)))
        b = jnp.pad(b, ((0, 0), (0, n_pad)))
    Np = N + n_pad

    # Sublane-pad M, then pad up to a multiple of the chosen M tile so every
    # block is full (avoids undefined padded-row reads on the last block).
    m_pad = (-M) % 8
    if m_pad:
        x = jnp.pad(x, ((0, m_pad), (0, 0)))
    Mp = M + m_pad
    tm = Mp if Mp <= max_tile_m else max_tile_m
    if Mp % tm:
        extra = tm - (Mp % tm)
        x = jnp.pad(x, ((0, extra), (0, 0)))
        Mp += extra

    tn = Np if Np <= max_tile_n else max_tile_n
    if Np % tn:
        extra = tn - (Np % tn)
        w = jnp.pad(w, ((0, 0), (0, extra)))
        b = jnp.pad(b, ((0, 0), (0, extra)))
        Np += extra

    out = pl.pallas_call(
        _matmul_bias_kernel,
        out_shape=jax.ShapeDtypeStruct((Mp, Np), jnp.float32),
        grid_spec=pltpu.PrefetchScalarGridSpec(
            num_scalar_prefetch=0,
            grid=(Mp // tm, Np // tn),
            in_specs=[
                pl.BlockSpec((tm, K), lambda i, j: (i, 0)),
                pl.BlockSpec((K, tn), lambda i, j: (0, j)),
                pl.BlockSpec((1, tn), lambda i, j: (0, j)),
            ],
            out_specs=pl.BlockSpec((tm, tn), lambda i, j: (i, j)),
        ),
        compiler_params=pltpu.CompilerParams(
            dimension_semantics=("parallel", "parallel"),
            vmem_limit_bytes=vmem_limit_bytes),
    )(x, w, b)
    return out[:M, :N]


# --------------------------------------------------------------------------- #
# Recurrent LSTM kernel: consumes precomputed xW (= emb @ W_ih0 + b0) slabs and
# emits h1 per timestep. Only the h-dependent matmuls live here. h0/c0/h1/c1
# are carried in fori_loop registers within a block and persisted across
# sequence blocks via VMEM scratch (per batch tile).            [R2][R3][R9]
# --------------------------------------------------------------------------- #
def _lstm_recurrent_kernel(xw_ref, whh0_ref, wih1_ref, whh1_ref, b1_ref,
                           h1out_ref,
                           h0_s, c0_s, h1_s, c1_s,
                           *, hidden, ts, unroll):
    H = hidden
    s_blk = pl.program_id(1)          # sequence axis of grid=(B_blocks, S_blocks)

    @pl.when(s_blk == 0)               # new batch tile -> zero initial state [R3]
    def _():
        h0_s[...] = jnp.zeros_like(h0_s)
        c0_s[...] = jnp.zeros_like(c0_s)
        h1_s[...] = jnp.zeros_like(h1_s)
        c1_s[...] = jnp.zeros_like(c1_s)

    # bf16 weights resident in vregs for the whole block; b1 broadcast hoisted.
    whh0 = whh0_ref[...]               # (H, 4H) bf16
    wih1 = wih1_ref[...]               # (H, 4H) bf16
    whh1 = whh1_ref[...]               # (H, 4H) bf16
    Bt = h0_s.shape[0]
    b1b = jnp.broadcast_to(b1_ref[...], (Bt, 4 * H))   # f32

    def gates_to_hc(gates, c):
        # PyTorch gate order [i | f | g | o]. At production H (multiple of 128)
        # these slices are lane-aligned; at the demo H=32 they are sub-lane.
        i = jax.nn.sigmoid(gates[:, 0 * H:1 * H])
        f = jax.nn.sigmoid(gates[:, 1 * H:2 * H])
        g = jnp.tanh(gates[:, 2 * H:3 * H])
        o = jax.nn.sigmoid(gates[:, 3 * H:4 * H])
        c_new = f * c + i * g
        h_new = o * jnp.tanh(c_new)
        return h_new, c_new

    def step(t, carry):
        h0, c0, h1, c1 = carry                                     # f32 (Bt, H)
        # Layer 0: input GEMM + b0 precomputed outside; only the recurrent dot.
        g0 = xw_ref[t] + jnp.dot(h0.astype(jnp.bfloat16), whh0,
                                 preferred_element_type=jnp.float32)
        h0, c0 = gates_to_hc(g0, c0)
        # Layer 1: two independent MXU pushes in vregs (no VMEM round-trip) [R2]
        g1 = (jnp.dot(h0.astype(jnp.bfloat16), wih1,
                      preferred_element_type=jnp.float32)
              + jnp.dot(h1.astype(jnp.bfloat16), whh1,
                        preferred_element_type=jnp.float32)
              + b1b)
        h1, c1 = gates_to_hc(g1, c1)
        h1out_ref[t] = h1
        return (h0, c0, h1, c1)

    carry = (h0_s[...], c0_s[...], h1_s[...], c1_s[...])
    h0, c0, h1, c1 = jax.lax.fori_loop(0, ts, step, carry, unroll=unroll)
    # Persist state across sequence blocks (one store per block, not per step).
    h0_s[...] = h0
    c0_s[...] = c0
    h1_s[...] = h1
    c1_s[...] = c1


def text_generation_forward(x_tokens, params, *, ts=None, bt=None,
                            vmem_limit_bytes=VMEM_LIMIT_BYTES):
    """x_tokens: (S, B) int32 token ids. Returns logits (S, B, V) f32."""
    S, B = x_tokens.shape
    H = params["whh0"].shape[0]
    V = params["wlin"].shape[1]

    # TODO(synk): data-dependent embedding gather stays in plain JAX; the table
    # is cast to bf16 first so the gathered activation stream is half-width.
    emb = params["embedding"].astype(jnp.bfloat16)[x_tokens]     # (S, B, E) bf16
    E = emb.shape[-1]

    if ts is None:
        ts = S if S <= 16 else 16         # tune per generation / VMEM budget [R5]
    assert S % ts == 0, (S, ts)

    # Pad batch to a sublane multiple so the recurrent dots have a useful MXU M
    # dimension; padded rows are independent garbage and are sliced off.   [R7]
    b_pad = (-B) % 8
    Bp = B + b_pad
    if b_pad:
        emb = jnp.pad(emb, ((0, 0), (0, b_pad), (0, 0)))
    if bt is None:
        bt = Bp if Bp <= 256 else Bp // 2   # split big batches across TCs (v7x)
    assert Bp % bt == 0, (Bp, bt)

    # bf16 weights for the MXU; biases stay f32.                           [R1]
    wih0 = params["wih0"].astype(jnp.bfloat16)
    whh0 = params["whh0"].astype(jnp.bfloat16)
    wih1 = params["wih1"].astype(jnp.bfloat16)
    whh1 = params["whh1"].astype(jnp.bfloat16)
    wlin = params["wlin"].astype(jnp.bfloat16)

    # (1) Hoisted input GEMM with b0 folded in: one batched (S*Bp, E) @ (E, 4H).
    xw = matmul_bias(emb.reshape(S * Bp, E), wih0, params["b0"],
                     vmem_limit_bytes=vmem_limit_bytes)
    xw = xw.reshape(S, Bp, 4 * H)

    # Back off the unroll at production H to avoid vreg spills.            [R9]
    unroll = True if H <= 256 else 8

    # (2) Recurrent kernel: parallel batch-tile axis x sequential sequence axis.
    h1_all = pl.pallas_call(
        functools.partial(_lstm_recurrent_kernel, hidden=H, ts=ts, unroll=unroll),
        out_shape=jax.ShapeDtypeStruct((S, Bp, H), jnp.float32),
        grid_spec=pltpu.PrefetchScalarGridSpec(
            num_scalar_prefetch=0,
            grid=(Bp // bt, S // ts),
            in_specs=[
                pl.BlockSpec((ts, bt, 4 * H), lambda b, s: (s, b, 0)),  # xW slab
                pl.BlockSpec((H, 4 * H), lambda b, s: (0, 0)),          # W_hh l0
                pl.BlockSpec((H, 4 * H), lambda b, s: (0, 0)),          # W_ih l1
                pl.BlockSpec((H, 4 * H), lambda b, s: (0, 0)),          # W_hh l1
                pl.BlockSpec((1, 4 * H), lambda b, s: (0, 0)),          # bias l1
            ],
            out_specs=pl.BlockSpec((ts, bt, H), lambda b, s: (s, b, 0)),
            scratch_shapes=[pltpu.VMEM((bt, H), jnp.float32)] * 4,  # h0 c0 h1 c1
        ),
        compiler_params=pltpu.CompilerParams(
            dimension_semantics=("parallel", "arbitrary"),   # [R3]
            vmem_limit_bytes=vmem_limit_bytes),
    )(xw, whh0, wih1, whh1, params["b1"])

    # (3) Deferred output projection: one batched (S*Bp, H) @ (H, V) + blin,
    #     N-tiled + lane-dense-padded inside matmul_bias.                  [R4]
    logits = matmul_bias(h1_all.reshape(S * Bp, H).astype(jnp.bfloat16),
                         wlin, params["blin"],
                         vmem_limit_bytes=vmem_limit_bytes)
    return logits.reshape(S, Bp, V)[:, :B, :]


# --------------------------------------------------------------------------- #
# Pure-JAX reference (lax.scan) with the same bf16 MXU-operand rounding points
# as the kernel path, so the comparison checks the kernels, not the cast.
# --------------------------------------------------------------------------- #
def reference_forward(x_tokens, params):
    bf = lambda a: a.astype(jnp.bfloat16)
    f32dot = lambda a, b: jnp.dot(bf(a), bf(b),
                                  preferred_element_type=jnp.float32)
    emb = bf(params["embedding"])[x_tokens]
    H = params["whh0"].shape[0]
    B = x_tokens.shape[1]

    def cell(x, h, c, wih, whh, b):
        gates = f32dot(x, wih) + f32dot(h, whh) + b
        i = jax.nn.sigmoid(gates[:, 0 * H:1 * H])
        f = jax.nn.sigmoid(gates[:, 1 * H:2 * H])
        g = jnp.tanh(gates[:, 2 * H:3 * H])
        o = jax.nn.sigmoid(gates[:, 3 * H:4 * H])
        c_new = f * c + i * g
        return o * jnp.tanh(c_new), c_new

    def step(carry, x_t):
        h0, c0, h1, c1 = carry
        h0, c0 = cell(x_t, h0, c0, params["wih0"], params["whh0"], params["b0"])
        h1, c1 = cell(h0, h1, c1, params["wih1"], params["whh1"], params["b1"])
        y = f32dot(h1, params["wlin"]) + params["blin"]
        return (h0, c0, h1, c1), y

    init = tuple(jnp.zeros((B, H), jnp.float32) for _ in range(4))
    _, ys = jax.lax.scan(step, init, emb)
    return ys


def init_params(key, vocab_size, lstm_num_hidden):
    """Deterministic synthetic parameters (shapes match the PyTorch module)."""
    H = lstm_num_hidden
    E = H // 2
    k = 1.0 / jnp.sqrt(jnp.float32(H))
    keys = jax.random.split(key, 12)
    u = lambda kk, shape: jax.random.uniform(kk, shape, jnp.float32, -k, k)
    params = {
        # nn.Embedding(vocab, E)
        "embedding": jax.random.normal(keys[0], (vocab_size, E), jnp.float32),
        # LSTM layer 0: weight_ih_l0 (4H,E), weight_hh_l0 (4H,H) -> pre-transposed
        "wih0": u(keys[1], (E, 4 * H)),
        "whh0": u(keys[2], (H, 4 * H)),
        "b0": (u(keys[3], (1, 4 * H)) + u(keys[4], (1, 4 * H))),  # b_ih + b_hh
        # LSTM layer 1: weight_ih_l1 (4H,H), weight_hh_l1 (4H,H) -> pre-transposed
        "wih1": u(keys[5], (H, 4 * H)),
        "whh1": u(keys[6], (H, 4 * H)),
        "b1": (u(keys[7], (1, 4 * H)) + u(keys[8], (1, 4 * H))),
        # nn.Linear(H, vocab) -> weight pre-transposed (H, V), bias (1, V)
        "wlin": u(keys[9], (H, vocab_size)),
        "blin": u(keys[10], (1, vocab_size)),
    }
    return params


if __name__ == "__main__":
    SEQ_LEN = 8
    BATCH = 2
    VOCAB = 32
    HIDDEN = 32  # lstm_num_hidden; embedding_size = 16

    key = jax.random.PRNGKey(0)
    pkey, xkey = jax.random.split(key)
    params = init_params(pkey, VOCAB, HIDDEN)

    # token ids, seq-major (S, B) as PyTorch nn.LSTM (batch_first=False) expects.
    x = jax.random.randint(xkey, (SEQ_LEN, BATCH), 0, VOCAB, dtype=jnp.int32)

    logits = jax.block_until_ready(text_generation_forward(x, params))
    ref = jax.block_until_ready(reference_forward(x, params))

    assert logits.shape == (SEQ_LEN, BATCH, VOCAB), logits.shape
    # Tolerance loosened vs. a pure-f32 reference since MXU operands are bf16;
    # the reference applies the same bf16 rounding so the residual is f32
    # accumulation-order noise only.
    assert jnp.allclose(logits, ref, atol=1e-2, rtol=1e-2), (
        float(jnp.max(jnp.abs(logits - ref))))

    print("KERNEL_OK")
</pallas_src>

<mosaic_0001>
module attributes {stable_mosaic.version = 11 : i64} {
  func.func @_matmul_bias_kernel(%arg0: i32, %arg1: i32, %arg2: memref<64x16xbf16, #tpu.memory_space<vmem>>, %arg3: memref<16x128xbf16, #tpu.memory_space<vmem>>, %arg4: memref<1x128xf32, #tpu.memory_space<vmem>>, %arg5: memref<64x128xf32, #tpu.memory_space<vmem>>) attributes {dimension_semantics = [#tpu.dimension_semantics<parallel>, #tpu.dimension_semantics<parallel>], iteration_bounds = array<i64: 1, 1>, scalar_prefetch = 0 : i64, scratch_operands = 0 : i64, tpu.core_type = #tpu.core_type<tc>, window_params = [{transform_indices = @transform_0, window_bounds = array<i64: 64, 16>}, {transform_indices = @transform_1, window_bounds = array<i64: 16, 128>}, {transform_indices = @transform_2, window_bounds = array<i64: 1, 128>}, {transform_indices = @transform_3, window_bounds = array<i64: 64, 128>}]} {
    %c0 = arith.constant 0 : index
    %c0_0 = arith.constant 0 : index
    %0 = vector.load %arg2[%c0, %c0_0] : memref<64x16xbf16, #tpu.memory_space<vmem>>, vector<64x16xbf16>
    %c0_1 = arith.constant 0 : index
    %c0_2 = arith.constant 0 : index
    %1 = vector.load %arg3[%c0_1, %c0_2] : memref<16x128xbf16, #tpu.memory_space<vmem>>, vector<16x128xbf16>
    %cst = arith.constant dense<0.000000e+00> : vector<64x128xf32>
    %2 = tpu.matmul %0, %1, %cst {dimension_numbers = #tpu.dot_dimension_numbers<[1], [0], [0], [1], [0, 0, 1, 1], [], []>} : vector<64x16xbf16>, vector<16x128xbf16>, vector<64x128xf32> -> vector<64x128xf32>
    %c0_3 = arith.constant 0 : index
    %c0_4 = arith.constant 0 : index
    %3 = vector.load %arg4[%c0_3, %c0_4] : memref<1x128xf32, #tpu.memory_space<vmem>>, vector<1x128xf32>
    %4 = vector.broadcast %3 : vector<1x128xf32> to vector<64x128xf32>
    %5 = arith.addf %2, %4 : vector<64x128xf32>
    %c0_5 = arith.constant 0 : index
    %c0_6 = arith.constant 0 : index
    %6 = vector.load %arg5[%c0_5, %c0_6] : memref<64x128xf32, #tpu.memory_space<vmem>>, vector<64x128xf32>
    tpu.vector_store %arg5[%c0_5, %c0_6], %5 {strides = array<i32>} : memref<64x128xf32, #tpu.memory_space<vmem>>, vector<64x128xf32>,
    return
  }
  func.func @transform_0(%arg0: i32, %arg1: i32) -> (i32, i32) {
    %c0_i32 = arith.constant 0 : i32
    %c0_i32_0 = arith.constant 0 : i32
    return %arg0, %c0_i32 : i32, i32
  }
  func.func @transform_1(%arg0: i32, %arg1: i32) -> (i32, i32) {
    %c0_i32 = arith.constant 0 : i32
    %c0_i32_0 = arith.constant 0 : i32
    return %c0_i32, %arg1 : i32, i32
  }
  func.func @transform_2(%arg0: i32, %arg1: i32) -> (i32, i32) {
    %c0_i32 = arith.constant 0 : i32
    %c0_i32_0 = arith.constant 0 : i32
    return %c0_i32, %arg1 : i32, i32
  }
  func.func @transform_3(%arg0: i32, %arg1: i32) -> (i32, i32) {
    %c0_i32 = arith.constant 0 : i32
    return %arg0, %arg1 : i32, i32
  }
}

</mosaic_0001>

<llo_original>
// kernel: tpu_custom_call.1
$region0: #{tpu_custom_call.1}
  #allocation0 [shape = 'u32[]', space=smem, size = 0x4, offset = 0x4, fixed_abs, tag = 'smem constant byte address 0x4 - core index']
  #allocation1 [shape = 'u32[144,128]{1,0:T(1,128)}', space=vmem, size = 0x12000, scoped, tag = 'internal scratch']
  %s0 = inlined_call_operand.vmem [shape: bf16[64,16], index: 0, kind: input, shape index: {}]
  %s1 = inlined_call_operand.vmem [shape: bf16[16,128], index: 1, kind: input, shape index: {}]
  %s2 = inlined_call_operand.vmem [shape: f32[1,128], index: 2, kind: input, shape index: {}]
  %s3 = inlined_call_operand.hbm [shape: f32[64,128], index: 3, kind: output, shape index: {}]
  %s4 = sld [smem:[#allocation0]]
  $region22: #{tpu_custom_call.1} parent=0
    _
  %s6 = ssub.s32 1, %s4
  %s7 = scalar_select 0, %s6, %s4
  $region1: #{tpu_custom_call.1} parent=0
    #allocation2 [shape = 'u8[32768]{0}', space=vmem, size = 0x8000, scoped, tag = 'output window, operand 0, single buffered']
    #allocation3 [shape = 's32[1]{0}', space=sflag, size = 0x4, scoped, tag = 'scoped memory for tpu_custom_call.1']
    %8 = vsyncpa [#allocation3], 0
    // Predicated region
    $region2: #{tpu_custom_call.1} parent=1 // pred_check
      _
    $region3: #{tpu_custom_call.1} parent=1 // pred_check_branch
      %10 = sbr.rel (0) target = $region5
    $region4: #{tpu_custom_call.1} parent=1 // pred_region
      _
    $region5: #{tpu_custom_call.1} parent=1 // pred_fallthru
      _
    // Predicated region
    $region6: #{tpu_custom_call.1} parent=1 // pred_check
      _
    $region7: #{tpu_custom_call.1} parent=1 // pred_check_branch
      %12 = sbr.rel (0) target = $region9
    $region8: #{tpu_custom_call.1} parent=1 // pred_region
      _
    $region9: #{tpu_custom_call.1} parent=1 // pred_fallthru
      _
    // Predicated region
    $region10: #{tpu_custom_call.1} parent=1 // pred_check
      _
    $region11: #{tpu_custom_call.1} parent=1 // pred_check_branch
      %14 = sbr.rel (0) target = $region13
    $region12: #{tpu_custom_call.1} parent=1 // pred_region
      _
    $region13: #{tpu_custom_call.1} parent=1 // pred_fallthru
      _
    %v16 = vld [vmem:[%s0] sm:$0xf]
    %v17 = vld [vmem:[%s0 + $0x4] sm:$0xf]
    %v18 = vld [vmem:[%s0 + $0x8] sm:$0xf]
    %v19 = vld [vmem:[%s0 + $0xc] sm:$0xf]
    %v20 = vld [vmem:[%s0 + $0x10] sm:$0xf]
    %v21 = vld [vmem:[%s0 + $0x14] sm:$0xf]
    %v22 = vld [vmem:[%s0 + $0x18] sm:$0xf]
    %v23 = vld [vmem:[%s0 + $0x1c] sm:$0xf]
    %v24 = vld [vmem:[%s1] sm:$0xf]
    %v25 = vld [vmem:[%s1 + $0x4] sm:$0xf]
    %v26 = vld [vmem:[%s2] sm:$0x1]
    %v28 = vlaneseq
    %v29 = vshrl.u32 %v28, 7
    %v30 = vsub.s32 0, %v29
    %v31 = vrot.slane %v26, %v30
    %v41 = vunpack.c.l.b16 %v16
    %v42 = vunpack.c.l.b16 %v17
    %v43 = vunpack.c.l.b16 %v18
    %v44 = vunpack.c.l.b16 %v19
    %v45 = vunpack.c.l.b16 %v20
    %v46 = vunpack.c.l.b16 %v21
    %v47 = vunpack.c.l.b16 %v22
    %v48 = vunpack.c.l.b16 %v23
    %v49 = vpack.c.b16 %v42, %v41
    %v50 = vpack.c.b16 %v44, %v43
    %v51 = vpack.c.b16 %v46, %v45
    %v52 = vpack.c.b16 %v48, %v47
    %v55 = vunpack.c.l.b16 %v24
    %v56 = vunpack.c.l.b16 %v25
    %v57 = vpack.c.b16 %v56, %v55
    %vm59 = vcmask 130048
    %v61 = vsel %vm59, %v49, 0
    %v64 = vsel %vm59, %v50, 0
    %v67 = vsel %vm59, %v51, 0
    %v70 = vsel %vm59, %v52, 0
    %72 = vmatprep.subr.bf16.mxu0 0
    %73 = vmatpush1.bf16.msra.mxu0 %v57
    %74 = vmatprep.subr.bf16.mxu0 0
    %75 = vmatpush1.bf16.msra.mxu0 0
    %76 = vmatprep.subr.bf16.mxu0 0
    %77 = vmatpush1.bf16.msra.mxu0 0
    %78 = vmatprep.subr.bf16.mxu0 0
    %79 = vmatpush1.bf16.msra.mxu0 0
    %80 = vmatprep.subr.bf16.mxu0 0
    %81 = vmatpush1.bf16.msra.mxu0 0
    %82 = vmatprep.subr.bf16.mxu0 0
    %83 = vmatpush1.bf16.msra.mxu0 0
    %84 = vmatprep.subr.bf16.mxu0 0
    %85 = vmatpush1.bf16.msra.mxu0 0
    %86 = vmatprep.subr.bf16.mxu0 0
    %87 = vmatpush1.bf16.msra.mxu0 0
    %88 = vmatprep.subr.bf16.mxu0 0
    %89 = vmatpush1.bf16.msra.mxu0 0
    %90 = vmatprep.subr.bf16.mxu0 0
    %91 = vmatpush1.bf16.msra.mxu0 0
    %92 = vmatprep.subr.bf16.mxu0 0
    %93 = vmatpush1.bf16.msra.mxu0 0
    %94 = vmatprep.subr.bf16.mxu0 0
    %95 = vmatpush1.bf16.msra.mxu0 0
    %96 = vmatprep.subr.bf16.mxu0 0
    %97 = vmatpush1.bf16.msra.mxu0 0
    %98 = vmatprep.subr.bf16.mxu0 0
    %99 = vmatpush1.bf16.msra.mxu0 0
    %100 = vmatprep.subr.bf16.mxu0 0
    %101 = vmatpush1.bf16.msra.mxu0 0
    %102 = vmatprep.subr.bf16.mxu0 0
    %103 = vmatpush1.bf16.msra.mxu0 0
    %104 = vmatprep.mubr.bf16.mxu0 0
    %105 = vmatmul.mubr.bf16.gmra.mrb[0].mxu0 %v61
    %v106 = vpop.f32.mrb[0].mxu0
    %v107 = vadd.f32 %v31, %v106
    %v108 = vpop.f32.mrb[0].mxu0
    %v109 = vpop.f32.mrb[0].mxu0
    %v110 = vadd.f32 %v31, %v109
    %v111 = vpop.f32.mrb[0].mxu0
    %112 = vmatprep.mubr.bf16.mxu0 0
    %113 = vmatmul.mubr.bf16.gmra.mrb[0].mxu0 %v64
    %v114 = vpop.f32.mrb[0].mxu0
    %v115 = vadd.f32 %v31, %v114
    %v116 = vpop.f32.mrb[0].mxu0
    %v117 = vpop.f32.mrb[0].mxu0
    %v118 = vadd.f32 %v31, %v117
    %v119 = vpop.f32.mrb[0].mxu0
    %120 = vmatprep.mubr.bf16.mxu0 0
    %121 = vmatmul.mubr.bf16.gmra.mrb[0].mxu0 %v67
    %v122 = vpop.f32.mrb[0].mxu0
    %v123 = vadd.f32 %v31, %v122
    %v124 = vpop.f32.mrb[0].mxu0
    %v125 = vpop.f32.mrb[0].mxu0
    %v126 = vadd.f32 %v31, %v125
    %v127 = vpop.f32.mrb[0].mxu0
    %128 = vmatprep.mubr.bf16.mxu0 0
    %129 = vmatmul.mubr.bf16.gmra.mrb[0].mxu0 %v70
    %v130 = vpop.f32.mrb[0].mxu0
    %v131 = vadd.f32 %v31, %v130
    %v132 = vpop.f32.mrb[0].mxu0
    %v133 = vpop.f32.mrb[0].mxu0
    %v134 = vadd.f32 %v31, %v133
    %v135 = vpop.f32.mrb[0].mxu0
    %136 = vdwg.mxu0
    %137 = vst [vmem:[#allocation2] sm:$0xff] %v107
    %138 = vst [vmem:[#allocation2 + $0x8] sm:$0xff] %v110
    %139 = vst [vmem:[#allocation2 + $0x10] sm:$0xff] %v115
    %140 = vst [vmem:[#allocation2 + $0x18] sm:$0xff] %v118
    %141 = vst [vmem:[#allocation2 + $0x20] sm:$0xff] %v123
    %142 = vst [vmem:[#allocation2 + $0x28] sm:$0xff] %v126
    %143 = vst [vmem:[#allocation2 + $0x30] sm:$0xff] %v131
    %144 = vst [vmem:[#allocation2 + $0x38] sm:$0xff] %v134
    // Predicated region
    $region14: #{tpu_custom_call.1} parent=1 // pred_check
      _
    $region15: #{tpu_custom_call.1} parent=1 // pred_check_branch
      %146 = sbr.rel (0) target = $region17
    $region16: #{tpu_custom_call.1} parent=1 // pred_region
      %s148 = ssub.s32 1024, 1024
      %149 = vsyncadd [#allocation3], %s148
      %s150 = sshll.u32 [#allocation2], 4
      %s151 = int_to_ptr.vmem [resolvable:$true] %s150
      %156 = dma.vmem_to_hbm [thread:$0]  %s151, 1024, %s3, [#allocation3], 128, 128, 8
    $region17: #{tpu_custom_call.1} parent=1 // pred_fallthru
      _
    // Predicated region
    $region18: #{tpu_custom_call.1} parent=1 // pred_check
      _
    $region19: #{tpu_custom_call.1} parent=1 // pred_check_branch
      %158 = sbr.rel (0) target = $region21
    $region20: #{tpu_custom_call.1} parent=1 // pred_region
      %159 = dma.done [#allocation3], 1024
    $region21: #{tpu_custom_call.1} parent=1 // pred_fallthru
      _
    %160 = vsyncpa [#allocation3], 1

</llo_original>
